<compile_context>
chip_gen: v7x
topology: tpu7x:2x2x1
jax: 0.10.0
libtpu: 0.0.40
codegen_flags: <defaults>
</compile_context>

<pallas_src>
import jax
import jax.numpy as jnp
from jax import lax
from jax.experimental import pallas as pl
from jax.experimental.pallas import tpu as pltpu


def _round_up(a, b):
    return (a + b - 1) // b * b


def _wavenet_layer_kernel(x_ref, c_ref,
                          wf_ref, wg_ref,        # causal conv (taps stacked), filter/gate halves (Cr, K*Cr)
                          wcf_ref, wcg_ref,      # conditioning 1x1 conv, filter/gate halves (Cr, Cc)
                          bf_ref, bg_ref,        # folded biases (causal + cond), (Cr, 1)
                          wr_ref, br_ref,        # residual 1x1 conv (Cr, Cr), (Cr, 1)
                          ws_ref, bs_ref,        # skip 1x1 conv (Cs, Cr), (Cs, 1)
                          res_ref, skip_ref):
    xs = x_ref[...]                               # (K*Cr, T_tile)  channel-stacked shifted input
    cc = c_ref[...]                               # (Cc,   T_tile)  conditioning

    # Filter / gate halves: one fused-tap matmul + one conditioning matmul each,
    # single bias broadcast-add per half.
    f = (jnp.dot(wf_ref[...], xs, preferred_element_type=jnp.float32)
         + jnp.dot(wcf_ref[...], cc, preferred_element_type=jnp.float32)
         + bf_ref[...])
    g = (jnp.dot(wg_ref[...], xs, preferred_element_type=jnp.float32)
         + jnp.dot(wcg_ref[...], cc, preferred_element_type=jnp.float32)
         + bg_ref[...])

    # Gated activation ('original'): sigmoid(chunk0) * tanh(chunk1), lane-dense.
    gate = jax.nn.sigmoid(f) * jnp.tanh(g)        # (Cr, T_tile)

    # Residual and skip 1x1 convs (outputs are lane-dense (C, T_tile) blocks).
    res_ref[...] = (jnp.dot(wr_ref[...], gate, preferred_element_type=jnp.float32)
                    + br_ref[...]).astype(res_ref.dtype)
    skip_ref[...] = (jnp.dot(ws_ref[...], gate, preferred_element_type=jnp.float32)
                     + bs_ref[...]).astype(skip_ref.dtype)


def wavenet_layer(x, c, params, *, kernel_size=2, dilation=1, t_tile=512):
    """x: (B, Cr, T) float32, c: (B, Cc, T) float32 (PyTorch NCT layout).

    Returns (residual, skip) in NCT layout, matching WavenetLayer.forward.
    """
    B, Cr, T = x.shape
    Cc = c.shape[1]
    Cs = params["w_skip"].shape[0]
    K = kernel_size
    pad = (K - 1) * dilation

    # Time tiling: lane-dense tiles (multiple of 128); pad T on the right up to
    # the tile grid (causal conv => padded tail never affects t < T).
    tt = max(128, _round_up(min(t_tile, _round_up(T, 128)), 128))
    Tp = _round_up(T, tt)
    nt = Tp // tt

    # Causal left pad + right pad, then stack the K dilated taps along the
    # channel axis (the time shift is done exactly once, outside the kernel).
    x_full = jnp.pad(x, ((0, 0), (0, 0), (pad, Tp - T)))          # (B, Cr, pad + Tp)
    x_stk = jnp.concatenate(
        [lax.slice_in_dim(x_full, k * dilation, k * dilation + Tp, axis=2)
         for k in range(K)], axis=1)                              # (B, K*Cr, Tp)
    c_p = jnp.pad(c, ((0, 0), (0, 0), (0, Tp - T)))               # (B, Cc, Tp)

    # Weight prep: Conv1d weight (O, I, K) -> (O, K*I) to match the stacking order.
    w_causal = jnp.transpose(params["w_causal"], (0, 2, 1)).reshape(2 * Cr, K * Cr)
    w_cond = params["w_cond"][:, :, 0]                            # (2Cr, Cc)
    wf, wg = w_causal[:Cr], w_causal[Cr:]
    wcf, wcg = w_cond[:Cr], w_cond[Cr:]
    b_tot = params["b_causal"] + params["b_cond"]                 # fold both bias adds
    bf = b_tot[:Cr].reshape(Cr, 1)
    bg = b_tot[Cr:].reshape(Cr, 1)
    wr = params["w_res"][:, :, 0]                                 # (Cr, Cr)
    br = params["b_res"].reshape(Cr, 1)
    ws = params["w_skip"][:, :, 0]                                # (Cs, Cr)
    bs = params["b_skip"].reshape(Cs, 1)

    def act_spec(ch):
        # per-(batch, time-tile) block; leading batch dim squeezed away.
        return pl.BlockSpec((None, ch, tt), lambda b, t: (b, 0, t))

    def full_spec(arr):
        nd = arr.ndim
        return pl.BlockSpec(arr.shape, lambda b, t, _n=nd: (0,) * _n)

    res, skip = pl.pallas_call(
        _wavenet_layer_kernel,
        out_shape=(jax.ShapeDtypeStruct((B, Cr, Tp), x.dtype),
                   jax.ShapeDtypeStruct((B, Cs, Tp), x.dtype)),
        grid=(B, nt),
        in_specs=[act_spec(K * Cr), act_spec(Cc),
                  full_spec(wf), full_spec(wg),
                  full_spec(wcf), full_spec(wcg),
                  full_spec(bf), full_spec(bg),
                  full_spec(wr), full_spec(br),
                  full_spec(ws), full_spec(bs)],
        out_specs=(act_spec(Cr), act_spec(Cs)),
        compiler_params=pltpu.CompilerParams(
            dimension_semantics=("parallel", "parallel")),
    )(x_stk, c_p, wf, wg, wcf, wcg, bf, bg, wr, br, ws, bs)

    # Drop the right time padding; outputs are already in NCT layout.
    return res[:, :, :T], skip[:, :, :T]


def reference_nct(x, c, params, *, kernel_size=2, dilation=1):
    """Pure-JAX reference matching the PyTorch forward (NCT layout)."""
    pad = (kernel_size - 1) * dilation
    Cr = x.shape[1]
    hp = lax.Precision.HIGHEST
    xp = jnp.pad(x, ((0, 0), (0, 0), (pad, 0)))
    y = lax.conv_general_dilated(
        xp, params["w_causal"], window_strides=(1,), padding="VALID",
        rhs_dilation=(dilation,), dimension_numbers=("NCH", "OIH", "NCH"),
        precision=hp,
    ) + params["b_causal"][None, :, None]
    y = y + (jnp.einsum("oc,bct->bot", params["w_cond"][:, :, 0], c, precision=hp)
             + params["b_cond"][None, :, None])
    gate = jax.nn.sigmoid(y[:, :Cr, :]) * jnp.tanh(y[:, Cr:, :])
    res = (jnp.einsum("oc,bct->bot", params["w_res"][:, :, 0], gate, precision=hp)
           + params["b_res"][None, :, None])
    skip = (jnp.einsum("oc,bct->bot", params["w_skip"][:, :, 0], gate, precision=hp)
            + params["b_skip"][None, :, None])
    return res, skip


if __name__ == "__main__":
    def make_params(key, Cr, Cs, Cc, K):
        ks = jax.random.split(key, 8)
        return {
            "w_causal": 0.1 * jax.random.normal(ks[0], (2 * Cr, Cr, K), jnp.float32),
            "b_causal": 0.1 * jax.random.normal(ks[1], (2 * Cr,), jnp.float32),
            "w_cond":   0.1 * jax.random.normal(ks[2], (2 * Cr, Cc, 1), jnp.float32),
            "b_cond":   0.1 * jax.random.normal(ks[3], (2 * Cr,), jnp.float32),
            "w_res":    0.1 * jax.random.normal(ks[4], (Cr, Cr, 1), jnp.float32),
            "b_res":    0.1 * jax.random.normal(ks[5], (Cr,), jnp.float32),
            "w_skip":   0.1 * jax.random.normal(ks[6], (Cs, Cr, 1), jnp.float32),
            "b_skip":   0.1 * jax.random.normal(ks[7], (Cs,), jnp.float32),
        }

    key = jax.random.PRNGKey(0)
    configs = [
        # (B, Cr, Cs, Cc, T,   K, dilation, t_tile)
        (2, 8, 16, 4, 300, 2, 2, 128),   # multi time-tile grid: grid = (2, 3)
        (1, 16, 8, 6, 97, 3, 4, 256),    # odd T, K=3, larger dilation
    ]
    for i, (B, Cr, Cs, Cc, T, K, DIL, TT) in enumerate(configs):
        kp, kx, kc, key = jax.random.split(key, 4)
        params = make_params(kp, Cr, Cs, Cc, K)
        x = jax.random.normal(kx, (B, Cr, T), jnp.float32)   # PyTorch NCT input
        c = jax.random.normal(kc, (B, Cc, T), jnp.float32)

        res, skip = wavenet_layer(x, c, params, kernel_size=K, dilation=DIL, t_tile=TT)
        jax.block_until_ready((res, skip))

        res_ref, skip_ref = reference_nct(x, c, params, kernel_size=K, dilation=DIL)
        assert jnp.allclose(res, res_ref, atol=1e-5, rtol=1e-5), f"residual mismatch (cfg {i})"
        assert jnp.allclose(skip, skip_ref, atol=1e-5, rtol=1e-5), f"skip mismatch (cfg {i})"

    print("KERNEL_OK")
</pallas_src>

<mosaic_0001>
module attributes {stable_mosaic.version = 11 : i64} {
  func.func @_wavenet_layer_kernel(%arg0: i32, %arg1: i32, %arg2: memref<1x16x128xf32, #tpu.memory_space<vmem>>, %arg3: memref<1x4x128xf32, #tpu.memory_space<vmem>>, %arg4: memref<8x16xf32, #tpu.memory_space<vmem>>, %arg5: memref<8x16xf32, #tpu.memory_space<vmem>>, %arg6: memref<8x4xf32, #tpu.memory_space<vmem>>, %arg7: memref<8x4xf32, #tpu.memory_space<vmem>>, %arg8: memref<8x1xf32, #tpu.memory_space<vmem>>, %arg9: memref<8x1xf32, #tpu.memory_space<vmem>>, %arg10: memref<8x8xf32, #tpu.memory_space<vmem>>, %arg11: memref<8x1xf32, #tpu.memory_space<vmem>>, %arg12: memref<16x8xf32, #tpu.memory_space<vmem>>, %arg13: memref<16x1xf32, #tpu.memory_space<vmem>>, %arg14: memref<1x8x128xf32, #tpu.memory_space<vmem>>, %arg15: memref<1x16x128xf32, #tpu.memory_space<vmem>>) attributes {dimension_semantics = [#tpu.dimension_semantics<parallel>, #tpu.dimension_semantics<parallel>], iteration_bounds = array<i64: 2, 3>, scalar_prefetch = 0 : i64, scratch_operands = 0 : i64, tpu.core_type = #tpu.core_type<tc>, window_params = [{transform_indices = @transform_0, window_bounds = array<i64: 1, 16, 128>}, {transform_indices = @transform_1, window_bounds = array<i64: 1, 4, 128>}, {pipeline_mode = #tpu.pipeline_mode<synchronous>, transform_indices = @transform_2, window_bounds = array<i64: 8, 16>}, {pipeline_mode = #tpu.pipeline_mode<synchronous>, transform_indices = @transform_3, window_bounds = array<i64: 8, 16>}, {pipeline_mode = #tpu.pipeline_mode<synchronous>, transform_indices = @transform_4, window_bounds = array<i64: 8, 4>}, {pipeline_mode = #tpu.pipeline_mode<synchronous>, transform_indices = @transform_5, window_bounds = array<i64: 8, 4>}, {pipeline_mode = #tpu.pipeline_mode<synchronous>, transform_indices = @transform_6, window_bounds = array<i64: 8, 1>}, {pipeline_mode = #tpu.pipeline_mode<synchronous>, transform_indices = @transform_7, window_bounds = array<i64: 8, 1>}, {pipeline_mode = #tpu.pipeline_mode<synchronous>, transform_indices = @transform_8, window_bounds = array<i64: 8, 8>}, {pipeline_mode = #tpu.pipeline_mode<synchronous>, transform_indices = @transform_9, window_bounds = array<i64: 8, 1>}, {pipeline_mode = #tpu.pipeline_mode<synchronous>, transform_indices = @transform_10, window_bounds = array<i64: 16, 8>}, {pipeline_mode = #tpu.pipeline_mode<synchronous>, transform_indices = @transform_11, window_bounds = array<i64: 16, 1>}, {transform_indices = @transform_12, window_bounds = array<i64: 1, 8, 128>}, {transform_indices = @transform_13, window_bounds = array<i64: 1, 16, 128>}]} {
    %c0 = arith.constant 0 : index
    %c0_0 = arith.constant 0 : index
    %c0_1 = arith.constant 0 : index
    %0 = vector.load %arg2[%c0, %c0_0, %c0_1] : memref<1x16x128xf32, #tpu.memory_space<vmem>>, vector<1x16x128xf32>
    %1 = vector.shape_cast %0 : vector<1x16x128xf32> to vector<16x128xf32>
    %c0_2 = arith.constant 0 : index
    %c0_3 = arith.constant 0 : index
    %c0_4 = arith.constant 0 : index
    %2 = vector.load %arg3[%c0_2, %c0_3, %c0_4] : memref<1x4x128xf32, #tpu.memory_space<vmem>>, vector<1x4x128xf32>
    %3 = vector.shape_cast %2 : vector<1x4x128xf32> to vector<4x128xf32>
    %c0_5 = arith.constant 0 : index
    %c0_6 = arith.constant 0 : index
    %4 = vector.load %arg4[%c0_5, %c0_6] : memref<8x16xf32, #tpu.memory_space<vmem>>, vector<8x16xf32>
    %cst = arith.constant dense<0.000000e+00> : vector<8x128xf32>
    %5 = tpu.matmul %4, %1, %cst {dimension_numbers = #tpu.dot_dimension_numbers<[1], [0], [0], [1], [0, 0, 1, 1], [], []>} : vector<8x16xf32>, vector<16x128xf32>, vector<8x128xf32> -> vector<8x128xf32>
    %c0_7 = arith.constant 0 : index
    %c0_8 = arith.constant 0 : index
    %6 = vector.load %arg6[%c0_7, %c0_8] : memref<8x4xf32, #tpu.memory_space<vmem>>, vector<8x4xf32>
    %cst_9 = arith.constant dense<0.000000e+00> : vector<8x128xf32>
    %7 = tpu.matmul %6, %3, %cst_9 {dimension_numbers = #tpu.dot_dimension_numbers<[1], [0], [0], [1], [0, 0, 1, 1], [], []>} : vector<8x4xf32>, vector<4x128xf32>, vector<8x128xf32> -> vector<8x128xf32>
    %8 = arith.addf %5, %7 : vector<8x128xf32>
    %c0_10 = arith.constant 0 : index
    %c0_11 = arith.constant 0 : index
    %9 = vector.load %arg8[%c0_10, %c0_11] : memref<8x1xf32, #tpu.memory_space<vmem>>, vector<8x1xf32>
    %10 = vector.broadcast %9 : vector<8x1xf32> to vector<8x128xf32>
    %11 = arith.addf %8, %10 : vector<8x128xf32>
    %c0_12 = arith.constant 0 : index
    %c0_13 = arith.constant 0 : index
    %12 = vector.load %arg5[%c0_12, %c0_13] : memref<8x16xf32, #tpu.memory_space<vmem>>, vector<8x16xf32>
    %cst_14 = arith.constant dense<0.000000e+00> : vector<8x128xf32>
    %13 = tpu.matmul %12, %1, %cst_14 {dimension_numbers = #tpu.dot_dimension_numbers<[1], [0], [0], [1], [0, 0, 1, 1], [], []>} : vector<8x16xf32>, vector<16x128xf32>, vector<8x128xf32> -> vector<8x128xf32>
    %c0_15 = arith.constant 0 : index
    %c0_16 = arith.constant 0 : index
    %14 = vector.load %arg7[%c0_15, %c0_16] : memref<8x4xf32, #tpu.memory_space<vmem>>, vector<8x4xf32>
    %cst_17 = arith.constant dense<0.000000e+00> : vector<8x128xf32>
    %15 = tpu.matmul %14, %3, %cst_17 {dimension_numbers = #tpu.dot_dimension_numbers<[1], [0], [0], [1], [0, 0, 1, 1], [], []>} : vector<8x4xf32>, vector<4x128xf32>, vector<8x128xf32> -> vector<8x128xf32>
    %16 = arith.addf %13, %15 : vector<8x128xf32>
    %c0_18 = arith.constant 0 : index
    %c0_19 = arith.constant 0 : index
    %17 = vector.load %arg9[%c0_18, %c0_19] : memref<8x1xf32, #tpu.memory_space<vmem>>, vector<8x1xf32>
    %18 = vector.broadcast %17 : vector<8x1xf32> to vector<8x128xf32>
    %19 = arith.addf %16, %18 : vector<8x128xf32>
    %20 = arith.negf %11 : vector<8x128xf32>
    %21 = math.exp %20 : vector<8x128xf32>
    %cst_20 = arith.constant 1.000000e+00 : f32
    %22 = vector.broadcast %cst_20 : f32 to vector<8x128xf32>
    %23 = arith.addf %22, %21 : vector<8x128xf32>
    %24 = arith.divf %22, %23 : vector<8x128xf32>
    %25 = math.tanh %19 : vector<8x128xf32>
    %26 = arith.mulf %24, %25 : vector<8x128xf32>
    %c0_21 = arith.constant 0 : index
    %c0_22 = arith.constant 0 : index
    %27 = vector.load %arg10[%c0_21, %c0_22] : memref<8x8xf32, #tpu.memory_space<vmem>>, vector<8x8xf32>
    %cst_23 = arith.constant dense<0.000000e+00> : vector<8x128xf32>
    %28 = tpu.matmul %27, %26, %cst_23 {dimension_numbers = #tpu.dot_dimension_numbers<[1], [0], [0], [1], [0, 0, 1, 1], [], []>} : vector<8x8xf32>, vector<8x128xf32>, vector<8x128xf32> -> vector<8x128xf32>
    %c0_24 = arith.constant 0 : index
    %c0_25 = arith.constant 0 : index
    %29 = vector.load %arg11[%c0_24, %c0_25] : memref<8x1xf32, #tpu.memory_space<vmem>>, vector<8x1xf32>
    %30 = vector.broadcast %29 : vector<8x1xf32> to vector<8x128xf32>
    %31 = arith.addf %28, %30 : vector<8x128xf32>
    %c0_26 = arith.constant 0 : index
    %c0_27 = arith.constant 0 : index
    %c0_28 = arith.constant 0 : index
    %32 = vector.load %arg14[%c0_26, %c0_27, %c0_28] : memref<1x8x128xf32, #tpu.memory_space<vmem>>, vector<1x8x128xf32>
    %33 = vector.shape_cast %32 : vector<1x8x128xf32> to vector<8x128xf32>
    %34 = vector.shape_cast %31 : vector<8x128xf32> to vector<1x8x128xf32>
    tpu.vector_store %arg14[%c0_26, %c0_27, %c0_28], %34 {strides = array<i32>} : memref<1x8x128xf32, #tpu.memory_space<vmem>>, vector<1x8x128xf32>,
    %c0_29 = arith.constant 0 : index
    %c0_30 = arith.constant 0 : index
    %35 = vector.load %arg12[%c0_29, %c0_30] : memref<16x8xf32, #tpu.memory_space<vmem>>, vector<16x8xf32>
    %cst_31 = arith.constant dense<0.000000e+00> : vector<16x128xf32>
    %36 = tpu.matmul %35, %26, %cst_31 {dimension_numbers = #tpu.dot_dimension_numbers<[1], [0], [0], [1], [0, 0, 1, 1], [], []>} : vector<16x8xf32>, vector<8x128xf32>, vector<16x128xf32> -> vector<16x128xf32>
    %c0_32 = arith.constant 0 : index
    %c0_33 = arith.constant 0 : index
    %37 = vector.load %arg13[%c0_32, %c0_33] : memref<16x1xf32, #tpu.memory_space<vmem>>, vector<16x1xf32>
    %38 = vector.broadcast %37 : vector<16x1xf32> to vector<16x128xf32>
    %39 = arith.addf %36, %38 : vector<16x128xf32>
    %c0_34 = arith.constant 0 : index
    %c0_35 = arith.constant 0 : index
    %c0_36 = arith.constant 0 : index
    %40 = vector.load %arg15[%c0_34, %c0_35, %c0_36] : memref<1x16x128xf32, #tpu.memory_space<vmem>>, vector<1x16x128xf32>
    %41 = vector.shape_cast %40 : vector<1x16x128xf32> to vector<16x128xf32>
    %42 = vector.shape_cast %39 : vector<16x128xf32> to vector<1x16x128xf32>
    tpu.vector_store %arg15[%c0_34, %c0_35, %c0_36], %42 {strides = array<i32>} : memref<1x16x128xf32, #tpu.memory_space<vmem>>, vector<1x16x128xf32>,
    return
  }
  func.func @transform_0(%arg0: i32, %arg1: i32) -> (i32, i32, i32) {
    %c0_i32 = arith.constant 0 : i32
    %c0_i32_0 = arith.constant 0 : i32
    return %arg0, %c0_i32, %arg1 : i32, i32, i32
  }
  func.func @transform_1(%arg0: i32, %arg1: i32) -> (i32, i32, i32) {
    %c0_i32 = arith.constant 0 : i32
    %c0_i32_0 = arith.constant 0 : i32
    return %arg0, %c0_i32, %arg1 : i32, i32, i32
  }
  func.func @transform_2(%arg0: i32, %arg1: i32) -> (i32, i32) {
    %c0_i32 = arith.constant 0 : i32
    %c0_i32_0 = arith.constant 0 : i32
    %c0_i32_1 = arith.constant 0 : i32
    return %c0_i32, %c0_i32_0 : i32, i32
  }
  func.func @transform_3(%arg0: i32, %arg1: i32) -> (i32, i32) {
    %c0_i32 = arith.constant 0 : i32
    %c0_i32_0 = arith.constant 0 : i32
    %c0_i32_1 = arith.constant 0 : i32
    return %c0_i32, %c0_i32_0 : i32, i32
  }
  func.func @transform_4(%arg0: i32, %arg1: i32) -> (i32, i32) {
    %c0_i32 = arith.constant 0 : i32
    %c0_i32_0 = arith.constant 0 : i32
    %c0_i32_1 = arith.constant 0 : i32
    return %c0_i32, %c0_i32_0 : i32, i32
  }
  func.func @transform_5(%arg0: i32, %arg1: i32) -> (i32, i32) {
    %c0_i32 = arith.constant 0 : i32
    %c0_i32_0 = arith.constant 0 : i32
    %c0_i32_1 = arith.constant 0 : i32
    return %c0_i32, %c0_i32_0 : i32, i32
  }
  func.func @transform_6(%arg0: i32, %arg1: i32) -> (i32, i32) {
    %c0_i32 = arith.constant 0 : i32
    %c0_i32_0 = arith.constant 0 : i32
    %c0_i32_1 = arith.constant 0 : i32
    return %c0_i32, %c0_i32_0 : i32, i32
  }
  func.func @transform_7(%arg0: i32, %arg1: i32) -> (i32, i32) {
    %c0_i32 = arith.constant 0 : i32
    %c0_i32_0 = arith.constant 0 : i32
    %c0_i32_1 = arith.constant 0 : i32
    return %c0_i32, %c0_i32_0 : i32, i32
  }
  func.func @transform_8(%arg0: i32, %arg1: i32) -> (i32, i32) {
    %c0_i32 = arith.constant 0 : i32
    %c0_i32_0 = arith.constant 0 : i32
    %c0_i32_1 = arith.constant 0 : i32
    return %c0_i32, %c0_i32_0 : i32, i32
  }
  func.func @transform_9(%arg0: i32, %arg1: i32) -> (i32, i32) {
    %c0_i32 = arith.constant 0 : i32
    %c0_i32_0 = arith.constant 0 : i32
    %c0_i32_1 = arith.constant 0 : i32
    return %c0_i32, %c0_i32_0 : i32, i32
  }
  func.func @transform_10(%arg0: i32, %arg1: i32) -> (i32, i32) {
    %c0_i32 = arith.constant 0 : i32
    %c0_i32_0 = arith.constant 0 : i32
    %c0_i32_1 = arith.constant 0 : i32
    return %c0_i32, %c0_i32_0 : i32, i32
  }
  func.func @transform_11(%arg0: i32, %arg1: i32) -> (i32, i32) {
    %c0_i32 = arith.constant 0 : i32
    %c0_i32_0 = arith.constant 0 : i32
    %c0_i32_1 = arith.constant 0 : i32
    return %c0_i32, %c0_i32_0 : i32, i32
  }
  func.func @transform_12(%arg0: i32, %arg1: i32) -> (i32, i32, i32) {
    %c0_i32 = arith.constant 0 : i32
    %c0_i32_0 = arith.constant 0 : i32
    return %arg0, %c0_i32, %arg1 : i32, i32, i32
  }
  func.func @transform_13(%arg0: i32, %arg1: i32) -> (i32, i32, i32) {
    %c0_i32 = arith.constant 0 : i32
    %c0_i32_0 = arith.constant 0 : i32
    return %arg0, %c0_i32, %arg1 : i32, i32, i32
  }
}

</mosaic_0001>

<llo_original>
// kernel: tpu_custom_call.1
$region0: #{tpu_custom_call.1}
  #allocation0 [shape = 'u32[]', space=smem, size = 0x4, offset = 0x4, fixed_abs, tag = 'smem constant byte address 0x4 - core index']
  #allocation1 [shape = 'u32[144,128]{1,0:T(1,128)}', space=vmem, size = 0x12000, scoped, tag = 'internal scratch']
  %s0 = inlined_call_operand.hbm [shape: f32[2,16,384], index: 0, kind: input, shape index: {}]
  %s1 = inlined_call_operand.vmem [shape: f32[2,4,384], index: 1, kind: input, shape index: {}]
  %s2 = inlined_call_operand.vmem [shape: f32[8,16], index: 2, kind: input, shape index: {}]
  %s3 = inlined_call_operand.vmem [shape: f32[8,16], index: 3, kind: input, shape index: {}]
  %s4 = inlined_call_operand.vmem [shape: f32[8,4], index: 4, kind: input, shape index: {}]
  %s5 = inlined_call_operand.vmem [shape: f32[8,4], index: 5, kind: input, shape index: {}]
  %s6 = inlined_call_operand.vmem [shape: f32[8,1], index: 6, kind: input, shape index: {}]
  %s7 = inlined_call_operand.vmem [shape: f32[8,1], index: 7, kind: input, shape index: {}]
  %s8 = inlined_call_operand.vmem [shape: f32[8,8], index: 8, kind: input, shape index: {}]
  %s9 = inlined_call_operand.vmem [shape: f32[8,1], index: 9, kind: input, shape index: {}]
  %s10 = inlined_call_operand.vmem [shape: f32[16,8], index: 10, kind: input, shape index: {}]
  %s11 = inlined_call_operand.vmem [shape: f32[16,1], index: 11, kind: input, shape index: {}]
  %s12 = inlined_call_operand.hbm [shape: f32[2,8,384], index: 12, kind: output, shape index: {0}]
  %s13 = inlined_call_operand.hbm [shape: f32[2,16,384], index: 13, kind: output, shape index: {1}]
  %14 = xla_tuple %s12, %s13
  %s15 = sld [smem:[#allocation0]]
  $region93: #{tpu_custom_call.1} parent=0
    _
  %s17 = ssub.s32 1, %s15
  %s18 = scalar_select 0, %s17, %s15
  $region1: #{tpu_custom_call.1} parent=0
    #allocation2 [shape = 'u8[16384]{0}', space=vmem, size = 0x4000, scoped, tag = 'input window, operand 0']
    #allocation3 [shape = 's32[2]{0}', space=sflag, size = 0x8, scoped, tag = 'scoped memory for tpu_custom_call.1']
    #allocation4 [shape = 's32[2]{0}', space=sflag, size = 0x8, scoped, tag = 'scoped memory for tpu_custom_call.1']
    #allocation5 [shape = 'u8[8192]{0}', space=vmem, size = 0x2000, scoped, tag = 'output window, operand 0']
    #allocation6 [shape = 'u8[16384]{0}', space=vmem, size = 0x4000, scoped, tag = 'output window, operand 1']
    #allocation7 [shape = 's32[2]{0}', space=sflag, size = 0x8, scoped, tag = 'scoped memory for tpu_custom_call.1']
    %19 = vsyncpa [#allocation3], 0
    %s20 = scalar_lea.sflag [#allocation3], 1
    %21 = vsyncpa %s20, 0
    %22 = vsyncpa [#allocation4], 0
    %s23 = scalar_lea.sflag [#allocation4], 1
    %24 = vsyncpa %s23, 0
    %25 = vsyncpa [#allocation7], 0
    %s26 = scalar_lea.sflag [#allocation7], 1
    %27 = vsyncpa %s26, 0
    loop: start=0, step=1, limit=8
    $region2: #{tpu_custom_call.1} parent=1 // loop_pre_header
      _
    $region3: #{tpu_custom_call.1} parent=1 // loop_header
      %s29 = sphi 0, %s33
      %p30 = scmp.ge.s32.totalorder %s29, 8
      %s36 = sphi 0, %s48
      %s37 = sphi 0, %s44
      %s38 = sphi 0, %s36
      %s39 = sphi 0, %s37
      %s40 = sphi 0, %s38
      %s41 = sphi 0, %s39
      %s53 = sphi 0, %s55
      %s56 = sphi 0, %s53
      %s57 = sphi 0, %s56
      %s73 = sphi 0, %s57
      %s81 = sphi 0, %s83
      %s84 = sphi 0, %s81
      %s85 = sphi 0, %s84
      %s101 = sphi 0, %s85
      %s105 = sphi 0, %s105
      %s107 = sphi 0, %s105
      %s108 = sphi 0, %s107
      %s122 = sphi 0, %s108
      %s126 = sphi 0, %s126
      %s128 = sphi 0, %s126
      %s129 = sphi 0, %s128
      %s143 = sphi 0, %s129
      %s147 = sphi 0, %s147
      %s149 = sphi 0, %s147
      %s150 = sphi 0, %s149
      %s164 = sphi 0, %s150
      %s168 = sphi 0, %s168
      %s170 = sphi 0, %s168
      %s171 = sphi 0, %s170
      %s185 = sphi 0, %s171
      %s189 = sphi 0, %s189
      %s191 = sphi 0, %s189
      %s192 = sphi 0, %s191
      %s206 = sphi 0, %s192
      %s210 = sphi 0, %s210
      %s212 = sphi 0, %s210
      %s213 = sphi 0, %s212
      %s227 = sphi 0, %s213
      %s231 = sphi 0, %s231
      %s233 = sphi 0, %s231
      %s234 = sphi 0, %s233
      %s248 = sphi 0, %s234
      %s252 = sphi 0, %s252
      %s254 = sphi 0, %s252
      %s255 = sphi 0, %s254
      %s269 = sphi 0, %s255
      %s273 = sphi 0, %s273
      %s275 = sphi 0, %s273
      %s276 = sphi 0, %s275
      %s290 = sphi 0, %s276
      %s294 = sphi 0, %s294
      %s296 = sphi 0, %s294
      %s297 = sphi 0, %s296
      %s311 = sphi 0, %s297
      %s319 = sphi 0, %s321
      %s322 = sphi 0, %s319
      %s323 = sphi 0, %s322
      %s339 = sphi 0, %s323
      %s347 = sphi 0, %s349
      %s350 = sphi 0, %s347
      %s351 = sphi 0, %s350
      %s367 = sphi 0, %s351
    $region4: #{tpu_custom_call.1} parent=1 // loop_header_branch
      %32 = sbr.rel (%p30) target = $region8
    $region5: #{tpu_custom_call.1} parent=1 // loop_body
      %s34 = ssub.s32 %s29, 1
      %s35 = ssub.s32 %s29, 2
      %s42 = sadd.s32 1, %s37
      %p43 = scmp.ge.s32.totalorder %s42, 3
      %s44 = scalar_select %p43, 0, %s42
      %s45 = sadd.s32 1, %s36
      %s46 = scalar_select %p43, %s45, %s36
      %p47 = scmp.ge.s32.totalorder %s46, 2
      %s48 = scalar_select %p47, 0, %s46
      %s49 = ssub.s32 %s36, %s48
      %s50 = ssub.s32 %s37, %s44
      %s51 = sor.u32 %s49, %s50
      %p52 = scmp.eq.s32.totalorder %s51, 0
      %s54 = sadd.s32 %s53, 1
      %s55 = scalar_select %p52, %s53, %s54
      %p58 = pneg %p52
      %p59 = scmp.eq.s32.totalorder %s29, 5
      %p60 = por %p58, %p59
      %p61 = scmp.ne.s32.totalorder %s53, %s56
      %p62 = scmp.eq.s32.totalorder %s29, 0
      %p63 = por %p61, %p62
      %p64 = scmp.ne.s32.totalorder %s53, %s56
      %p65 = scmp.eq.s32.totalorder %s34, 5
      %p66 = por %p64, %p65
      %p67 = scmp.ne.s32.totalorder %s56, %s57
      %p68 = scmp.eq.s32.totalorder %s34, 0
      %p69 = por %p67, %p68
      %p70 = scmp.ne.s32.totalorder %s56, %s57
      %p71 = scmp.eq.s32.totalorder %s35, 5
      %p72 = por %p70, %p71
      %p74 = scmp.ne.s32.totalorder %s57, %s73
      %p75 = scmp.eq.s32.totalorder %s35, 0
      %p76 = por %p74, %p75
      %s77 = ssub.s32 %s36, %s48
      %s78 = ssub.s32 %s37, %s44
      %s79 = sor.u32 %s77, %s78
      %p80 = scmp.eq.s32.totalorder %s79, 0
      %s82 = sadd.s32 %s81, 1
      %s83 = scalar_select %p80, %s81, %s82
      %p86 = pneg %p80
      %p87 = scmp.eq.s32.totalorder %s29, 5
      %p88 = por %p86, %p87
      %p89 = scmp.ne.s32.totalorder %s81, %s84
      %p90 = scmp.eq.s32.totalorder %s29, 0
      %p91 = por %p89, %p90
      %p92 = scmp.ne.s32.totalorder %s81, %s84
      %p93 = scmp.eq.s32.totalorder %s34, 5
      %p94 = por %p92, %p93
      %p95 = scmp.ne.s32.totalorder %s84, %s85
      %p96 = scmp.eq.s32.totalorder %s34, 0
      %p97 = por %p95, %p96
      %p98 = scmp.ne.s32.totalorder %s84, %s85
      %p99 = scmp.eq.s32.totalorder %s35, 5
      %p100 = por %p98, %p99
      %p102 = scmp.ne.s32.totalorder %s85, %s101
      %p103 = scmp.eq.s32.totalorder %s35, 0
      %p104 = por %p102, %p103
      %s106 = sadd.s32 %s105, 1
      %p109 = scmp.eq.s32.totalorder %s29, 5
      %p110 = scmp.ne.s32.totalorder %s105, %s107
      %p111 = scmp.eq.s32.totalorder %s29, 0
      %p112 = por %p110, %p111
      %p113 = scmp.ne.s32.totalorder %s105, %s107
      %p114 = scmp.eq.s32.totalorder %s34, 5
      %p115 = por %p113, %p114
      %p116 = scmp.ne.s32.totalorder %s107, %s108
      %p117 = scmp.eq.s32.totalorder %s34, 0
      %p118 = por %p116, %p117
      %p119 = scmp.ne.s32.totalorder %s107, %s108
      %p120 = scmp.eq.s32.totalorder %s35, 5
      %p121 = por %p119, %p120
      %p123 = scmp.ne.s32.totalorder %s108, %s122
      %p124 = scmp.eq.s32.totalorder %s35, 0
      %p125 = por %p123, %p124
      %s127 = sadd.s32 %s126, 1
      %p130 = scmp.eq.s32.totalorder %s29, 5
      %p131 = scmp.ne.s32.totalorder %s126, %s128
      %p132 = scmp.eq.s32.totalorder %s29, 0
      %p133 = por %p131, %p132
      %p134 = scmp.ne.s32.totalorder %s126, %s128
      %p135 = scmp.eq.s32.totalorder %s34, 5
      %p136 = por %p134, %p135
      %p137 = scmp.ne.s32.totalorder %s128, %s129
      %p138 = scmp.eq.s32.totalorder %s34, 0
      %p139 = por %p137, %p138
      %p140 = scmp.ne.s32.totalorder %s128, %s129
      %p141 = scmp.eq.s32.totalorder %s35, 5
      %p142 = por %p140, %p141
      %p144 = scmp.ne.s32.totalorder %s129, %s143
      %p145 = scmp.eq.s32.totalorder %s35, 0
      %p146 = por %p144, %p145
      %s148 = sadd.s32 %s147, 1
      %p151 = scmp.eq.s32.totalorder %s29, 5
      %p152 = scmp.ne.s32.totalorder %s147, %s149
      %p153 = scmp.eq.s32.totalorder %s29, 0
      %p154 = por %p152, %p153
      %p155 = scmp.ne.s32.totalorder %s147, %s149
      %p156 = scmp.eq.s32.totalorder %s34, 5
      %p157 = por %p155, %p156
      %p158 = scmp.ne.s32.totalorder %s149, %s150
      %p159 = scmp.eq.s32.totalorder %s34, 0
      %p160 = por %p158, %p159
      %p161 = scmp.ne.s32.totalorder %s149, %s150
      %p162 = scmp.eq.s32.totalorder %s35, 5
      %p163 = por %p161, %p162
      %p165 = scmp.ne.s32.totalorder %s150, %s164
      %p166 = scmp.eq.s32.totalorder %s35, 0
      %p167 = por %p165, %p166
      %s169 = sadd.s32 %s168, 1
      %p172 = scmp.eq.s32.totalorder %s29, 5
      %p173 = scmp.ne.s32.totalorder %s168, %s170
      %p174 = scmp.eq.s32.totalorder %s29, 0
      %p175 = por %p173, %p174
      %p176 = scmp.ne.s32.totalorder %s168, %s170
      %p177 = scmp.eq.s32.totalorder %s34, 5
      %p178 = por %p176, %p177
      %p179 = scmp.ne.s32.totalorder %s170, %s171
      %p180 = scmp.eq.s32.totalorder %s34, 0
      %p181 = por %p179, %p180
      %p182 = scmp.ne.s32.totalorder %s170, %s171
      %p183 = scmp.eq.s32.totalorder %s35, 5
      %p184 = por %p182, %p183
      %p186 = scmp.ne.s32.totalorder %s171, %s185
      %p187 = scmp.eq.s32.totalorder %s35, 0
      %p188 = por %p186, %p187
      %s190 = sadd.s32 %s189, 1
      %p193 = scmp.eq.s32.totalorder %s29, 5
      %p194 = scmp.ne.s32.totalorder %s189, %s191
      %p195 = scmp.eq.s32.totalorder %s29, 0
      %p196 = por %p194, %p195
      %p197 = scmp.ne.s32.totalorder %s189, %s191
      %p198 = scmp.eq.s32.totalorder %s34, 5
      %p199 = por %p197, %p198
      %p200 = scmp.ne.s32.totalorder %s191, %s192
      %p201 = scmp.eq.s32.totalorder %s34, 0
      %p202 = por %p200, %p201
      %p203 = scmp.ne.s32.totalorder %s191, %s192
      %p204 = scmp.eq.s32.totalorder %s35, 5
      %p205 = por %p203, %p204
      %p207 = scmp.ne.s32.totalorder %s192, %s206
      %p208 = scmp.eq.s32.totalorder %s35, 0
      %p209 = por %p207, %p208
      %s211 = sadd.s32 %s210, 1
      %p214 = scmp.eq.s32.totalorder %s29, 5
      %p215 = scmp.ne.s32.totalorder %s210, %s212
      %p216 = scmp.eq.s32.totalorder %s29, 0
      %p217 = por %p215, %p216
      %p218 = scmp.ne.s32.totalorder %s210, %s212
      %p219 = scmp.eq.s32.totalorder %s34, 5
      %p220 = por %p218, %p219
      %p221 = scmp.ne.s32.totalorder %s212, %s213
      %p222 = scmp.eq.s32.totalorder %s34, 0
      %p223 = por %p221, %p222
      %p224 = scmp.ne.s32.totalorder %s212, %s213
      %p225 = scmp.eq.s32.totalorder %s35, 5
      %p226 = por %p224, %p225
      %p228 = scmp.ne.s32.totalorder %s213, %s227
      %p229 = scmp.eq.s32.totalorder %s35, 0
      %p230 = por %p228, %p229
      %s232 = sadd.s32 %s231, 1
      %p235 = scmp.eq.s32.totalorder %s29, 5
      %p236 = scmp.ne.s32.totalorder %s231, %s233
      %p237 = scmp.eq.s32.totalorder %s29, 0
      %p238 = por %p236, %p237
      %p239 = scmp.ne.s32.totalorder %s231, %s233
      %p240 = scmp.eq.s32.totalorder %s34, 5
      %p241 = por %p239, %p240
      %p242 = scmp.ne.s32.totalorder %s233, %s234
      %p243 = scmp.eq.s32.totalorder %s34, 0
      %p244 = por %p242, %p243
      %p245 = scmp.ne.s32.totalorder %s233, %s234
      %p246 = scmp.eq.s32.totalorder %s35, 5
      %p247 = por %p245, %p246
      %p249 = scmp.ne.s32.totalorder %s234, %s248
      %p250 = scmp.eq.s32.totalorder %s35, 0
      %p251 = por %p249, %p250
      %s253 = sadd.s32 %s252, 1
      %p256 = scmp.eq.s32.totalorder %s29, 5
      %p257 = scmp.ne.s32.totalorder %s252, %s254
      %p258 = scmp.eq.s32.totalorder %s29, 0
      %p259 = por %p257, %p258
      %p260 = scmp.ne.s32.totalorder %s252, %s254
      %p261 = scmp.eq.s32.totalorder %s34, 5
      %p262 = por %p260, %p261
      %p263 = scmp.ne.s32.totalorder %s254, %s255
      %p264 = scmp.eq.s32.totalorder %s34, 0
      %p265 = por %p263, %p264
      %p266 = scmp.ne.s32.totalorder %s254, %s255
      %p267 = scmp.eq.s32.totalorder %s35, 5
      %p268 = por %p266, %p267
      %p270 = scmp.ne.s32.totalorder %s255, %s269
      %p271 = scmp.eq.s32.totalorder %s35, 0
      %p272 = por %p270, %p271
      %s274 = sadd.s32 %s273, 1
      %p277 = scmp.eq.s32.totalorder %s29, 5
      %p278 = scmp.ne.s32.totalorder %s273, %s275
      %p279 = scmp.eq.s32.totalorder %s29, 0
      %p280 = por %p278, %p279
      %p281 = scmp.ne.s32.totalorder %s273, %s275
      %p282 = scmp.eq.s32.totalorder %s34, 5
      %p283 = por %p281, %p282
      %p284 = scmp.ne.s32.totalorder %s275, %s276
      %p285 = scmp.eq.s32.totalorder %s34, 0
      %p286 = por %p284, %p285
      %p287 = scmp.ne.s32.totalorder %s275, %s276
      %p288 = scmp.eq.s32.totalorder %s35, 5
      %p289 = por %p287, %p288
      %p291 = scmp.ne.s32.totalorder %s276, %s290
      %p292 = scmp.eq.s32.totalorder %s35, 0
      %p293 = por %p291, %p292
      %s295 = sadd.s32 %s294, 1
      %p298 = scmp.eq.s32.totalorder %s29, 5
      %p299 = scmp.ne.s32.totalorder %s294, %s296
      %p300 = scmp.eq.s32.totalorder %s29, 0
      %p301 = por %p299, %p300
      %p302 = scmp.ne.s32.totalorder %s294, %s296
      %p303 = scmp.eq.s32.totalorder %s34, 5
      %p304 = por %p302, %p303
      %p305 = scmp.ne.s32.totalorder %s296, %s297
      %p306 = scmp.eq.s32.totalorder %s34, 0
      %p307 = por %p305, %p306
      %p308 = scmp.ne.s32.totalorder %s296, %s297
      %p309 = scmp.eq.s32.totalorder %s35, 5
      %p310 = por %p308, %p309
      %p312 = scmp.ne.s32.totalorder %s297, %s311
      %p313 = scmp.eq.s32.totalorder %s35, 0
      %p314 = por %p312, %p313
      %s315 = ssub.s32 %s36, %s48
      %s316 = ssub.s32 %s37, %s44
      %s317 = sor.u32 %s315, %s316
      %p318 = scmp.eq.s32.totalorder %s317, 0
      %s320 = sadd.s32 %s319, 1
      %s321 = scalar_select %p318, %s319, %s320
      %p324 = pneg %p318
      %p325 = scmp.eq.s32.totalorder %s29, 5
      %p326 = por %p324, %p325
      %p327 = scmp.ne.s32.totalorder %s319, %s322
      %p328 = scmp.eq.s32.totalorder %s29, 0
      %p329 = por %p327, %p328
      %p330 = scmp.ne.s32.totalorder %s319, %s322
      %p331 = scmp.eq.s32.totalorder %s34, 5
      %p332 = por %p330, %p331
      %p333 = scmp.ne.s32.totalorder %s322, %s323
      %p334 = scmp.eq.s32.totalorder %s34, 0
      %p335 = por %p333, %p334
      %p336 = scmp.ne.s32.totalorder %s322, %s323
      %p337 = scmp.eq.s32.totalorder %s35, 5
      %p338 = por %p336, %p337
      %p340 = scmp.ne.s32.totalorder %s323, %s339
      %p341 = scmp.eq.s32.totalorder %s35, 0
      %p342 = por %p340, %p341
      %s343 = ssub.s32 %s36, %s48
      %s344 = ssub.s32 %s37, %s44
      %s345 = sor.u32 %s343, %s344
      %p346 = scmp.eq.s32.totalorder %s345, 0
      %s348 = sadd.s32 %s347, 1
      %s349 = scalar_select %p346, %s347, %s348
      %p352 = pneg %p346
      %p353 = scmp.eq.s32.totalorder %s29, 5
      %p354 = por %p352, %p353
      %p355 = scmp.ne.s32.totalorder %s347, %s350
      %p356 = scmp.eq.s32.totalorder %s29, 0
      %p357 = por %p355, %p356
      %p358 = scmp.ne.s32.totalorder %s347, %s350
      %p359 = scmp.eq.s32.totalorder %s34, 5
      %p360 = por %p358, %p359
      %p361 = scmp.ne.s32.totalorder %s350, %s351
      %p362 = scmp.eq.s32.totalorder %s34, 0
      %p363 = por %p361, %p362
      %p364 = scmp.ne.s32.totalorder %s350, %s351
      %p365 = scmp.eq.s32.totalorder %s35, 5
      %p366 = por %p364, %p365
      %p368 = scmp.ne.s32.totalorder %s351, %s367
      %p369 = scmp.eq.s32.totalorder %s35, 0
      %p370 = por %p368, %p369
      %p371 = scmp.le.s32.totalorder 1, %s29
      %p372 = scmp.lt.s32.totalorder %s29, 7
      %p373 = pnand %p371, %p372
      %p374 = pneg %p373
      // Predicated region
      $region9: #{tpu_custom_call.1} parent=5 // pred_check
        _
      $region10: #{tpu_custom_call.1} parent=5 // pred_check_branch
        %376 = sbr.rel (%p373) target = $region12
      $region11: #{tpu_custom_call.1} parent=5 // pred_region
        %s377 = ssub.s32 %s29, 1
        // Predicated region
        $region13: #{tpu_custom_call.1} parent=11 // pred_check
          %p378 = pneg %p118
        $region14: #{tpu_custom_call.1} parent=11 // pred_check_branch
          %380 = sbr.rel (%p378) target = $region16
        $region15: #{tpu_custom_call.1} parent=11 // pred_region
          _
        $region16: #{tpu_custom_call.1} parent=11 // pred_fallthru
          _
        // Predicated region
        $region17: #{tpu_custom_call.1} parent=11 // pred_check
          %p381 = pneg %p139
        $region18: #{tpu_custom_call.1} parent=11 // pred_check_branch
          %383 = sbr.rel (%p381) target = $region20
        $region19: #{tpu_custom_call.1} parent=11 // pred_region
          _
        $region20: #{tpu_custom_call.1} parent=11 // pred_fallthru
          _
        // Predicated region
        $region21: #{tpu_custom_call.1} parent=11 // pred_check
          %p384 = pneg %p160
        $region22: #{tpu_custom_call.1} parent=11 // pred_check_branch
          %386 = sbr.rel (%p384) target = $region24
        $region23: #{tpu_custom_call.1} parent=11 // pred_region
          _
        $region24: #{tpu_custom_call.1} parent=11 // pred_fallthru
          _
        // Predicated region
        $region25: #{tpu_custom_call.1} parent=11 // pred_check
          %p387 = pneg %p181
        $region26: #{tpu_custom_call.1} parent=11 // pred_check_branch
          %389 = sbr.rel (%p387) target = $region28
        $region27: #{tpu_custom_call.1} parent=11 // pred_region
          _
        $region28: #{tpu_custom_call.1} parent=11 // pred_fallthru
          _
        // Predicated region
        $region29: #{tpu_custom_call.1} parent=11 // pred_check
          %p390 = pneg %p202
        $region30: #{tpu_custom_call.1} parent=11 // pred_check_branch
          %392 = sbr.rel (%p390) target = $region32
        $region31: #{tpu_custom_call.1} parent=11 // pred_region
          _
        $region32: #{tpu_custom_call.1} parent=11 // pred_fallthru
          _
        // Predicated region
        $region33: #{tpu_custom_call.1} parent=11 // pred_check
          %p393 = pneg %p223
        $region34: #{tpu_custom_call.1} parent=11 // pred_check_branch
          %395 = sbr.rel (%p393) target = $region36
        $region35: #{tpu_custom_call.1} parent=11 // pred_region
          _
        $region36: #{tpu_custom_call.1} parent=11 // pred_fallthru
          _
        // Predicated region
        $region37: #{tpu_custom_call.1} parent=11 // pred_check
          %p396 = pneg %p244
        $region38: #{tpu_custom_call.1} parent=11 // pred_check_branch
          %398 = sbr.rel (%p396) target = $region40
        $region39: #{tpu_custom_call.1} parent=11 // pred_region
          _
        $region40: #{tpu_custom_call.1} parent=11 // pred_fallthru
          _
        // Predicated region
        $region41: #{tpu_custom_call.1} parent=11 // pred_check
          %p399 = pneg %p265
        $region42: #{tpu_custom_call.1} parent=11 // pred_check_branch
          %401 = sbr.rel (%p399) target = $region44
        $region43: #{tpu_custom_call.1} parent=11 // pred_region
          _
        $region44: #{tpu_custom_call.1} parent=11 // pred_fallthru
          _
        // Predicated region
        $region45: #{tpu_custom_call.1} parent=11 // pred_check
          %p402 = pneg %p286
        $region46: #{tpu_custom_call.1} parent=11 // pred_check_branch
          %404 = sbr.rel (%p402) target = $region48
        $region47: #{tpu_custom_call.1} parent=11 // pred_region
          _
        $region48: #{tpu_custom_call.1} parent=11 // pred_fallthru
          _
        // Predicated region
        $region49: #{tpu_custom_call.1} parent=11 // pred_check
          %p405 = pneg %p307
        $region50: #{tpu_custom_call.1} parent=11 // pred_check_branch
          %407 = sbr.rel (%p405) target = $region52
        $region51: #{tpu_custom_call.1} parent=11 // pred_region
          _
        $region52: #{tpu_custom_call.1} parent=11 // pred_fallthru
          _
      $region12: #{tpu_custom_call.1} parent=5 // pred_fallthru
        _
      %p408 = scmp.lt.s32.totalorder %s29, 6
      // Predicated region
      $region53: #{tpu_custom_call.1} parent=5 // pred_check
        %p409 = pneg %p408
      $region54: #{tpu_custom_call.1} parent=5 // pred_check_branch
        %411 = sbr.rel (%p409) target = $region56
      $region55: #{tpu_custom_call.1} parent=5 // pred_region
        // Predicated region
        $region57: #{tpu_custom_call.1} parent=55 // pred_check
          %p412 = pneg %p63
        $region58: #{tpu_custom_call.1} parent=55 // pred_check_branch
          %414 = sbr.rel (%p412) target = $region60
        $region59: #{tpu_custom_call.1} parent=55 // pred_region
          %s415 = sand.u32 %s53, 1
          %s416 = scalar_lea.sflag [#allocation3], %s415
          %s417 = sand.u32 %s53, 1
          %s418 = smul.addr %s417, 16
          %s419 = scalar_lea.vmem [#allocation2], %s418
          %s421 = ssub.s32 256, 256
          %422 = vsyncadd %s416, %s421
          %s423 = smul.addr %s36, 6
          %s424 = sadd.s32 %s37, %s423
          %s425 = smul.addr %s424, 128
          %s426 = scalar_lea.hbm %s0, %s425
          %s427 = sshll.u32 %s419, 4
          %s428 = int_to_ptr.vmem [resolvable:$true] %s427
          %433 = dma.hbm_to_vmem [thread:$0]  %s426, 256, %s428, %s416, 384, 128, 8
        $region60: #{tpu_custom_call.1} parent=55 // pred_fallthru
          _
        // Predicated region
        $region61: #{tpu_custom_call.1} parent=55 // pred_check
          %p434 = pneg %p91
        $region62: #{tpu_custom_call.1} parent=55 // pred_check_branch
          %436 = sbr.rel (%p434) target = $region64
        $region63: #{tpu_custom_call.1} parent=55 // pred_region
          %p437 = scmp.lt.s32.totalorder %s36, 1
          %s438 = scalar_select %p437, %s36, 1
          %p439 = scmp.lt.s32.totalorder %s37, 2
          %s440 = scalar_select %p439, %s37, 2
          %s441 = smul.addr %s438, 3
          %s442 = sadd.s32 %s440, %s441
          %s443 = smul.addr %s442, 4
          %s444 = scalar_lea.vmem %s1, %s443
        $region64: #{tpu_custom_call.1} parent=55 // pred_fallthru
          _
      $region56: #{tpu_custom_call.1} parent=5 // pred_fallthru
        _
      %p445 = scmp.le.s32.totalorder 1, %s29
      %p446 = scmp.lt.s32.totalorder %s29, 7
      %p447 = pnand %p445, %p446
      %p448 = pneg %p447
      // Predicated region
      $region65: #{tpu_custom_call.1} parent=5 // pred_check
        _
      $region66: #{tpu_custom_call.1} parent=5 // pred_check_branch
        %450 = sbr.rel (%p447) target = $region68
      $region67: #{tpu_custom_call.1} parent=5 // pred_region
        %s451 = ssub.s32 %s29, 1
        %s452 = sand.u32 %s56, 1
        %s453 = scalar_lea.sflag [#allocation3], %s452
        %s454 = sand.u32 %s56, 1
        %s455 = smul.addr %s454, 16
        %s456 = scalar_lea.vmem [#allocation2], %s455
        // Predicated region
        $region69: #{tpu_custom_call.1} parent=67 // pred_check
          %p457 = pneg %p69
        $region70: #{tpu_custom_call.1} parent=67 // pred_check_branch
          %459 = sbr.rel (%p457) target = $region72
        $region71: #{tpu_custom_call.1} parent=67 // pred_region
          %460 = dma.done %s453, 256
        $region72: #{tpu_custom_call.1} parent=67 // pred_fallthru
          _
        %s461 = sand.u32 %s56, 1
        %s462 = scalar_lea.sflag [#allocation3], %s461
        %s463 = sand.u32 %s56, 1
        %s464 = smul.addr %s463, 16
        %s465 = scalar_lea.vmem [#allocation2], %s464
        %p466 = pneg %p69
        %p467 = pneg %p66
        %p468 = scmp.lt.s32.totalorder %s38, 1
        %s469 = scalar_select %p468, %s38, 1
        %p470 = scmp.lt.s32.totalorder %s39, 2
        %s471 = scalar_select %p470, %s39, 2
        %s472 = smul.addr %s469, 3
        %s473 = sadd.s32 %s471, %s472
        %s474 = smul.addr %s473, 4
        %s475 = scalar_lea.vmem %s1, %s474
        %p476 = pneg %p97
        %p477 = pneg %p94
        %p478 = pneg %p118
        %p479 = pneg %p115
        %p480 = pneg %p139
        %p481 = pneg %p136
        %p482 = pneg %p160
        %p483 = pneg %p157
        %p484 = pneg %p181
        %p485 = pneg %p178
        %p486 = pneg %p202
        %p487 = pneg %p199
        %p488 = pneg %p223
        %p489 = pneg %p220
        %p490 = pneg %p244
        %p491 = pneg %p241
        %p492 = pneg %p265
        %p493 = pneg %p262
        %p494 = pneg %p286
        %p495 = pneg %p283
        %p496 = pneg %p307
        %p497 = pneg %p304
        %p498 = pneg %p335
        %p499 = pneg %p332
        %s500 = sand.u32 %s322, 1
        %s501 = scalar_lea.sflag [#allocation4], %s500
        %s502 = sand.u32 %s322, 1
        %s503 = smul.addr %s502, 8
        %s504 = scalar_lea.vmem [#allocation5], %s503
        %p505 = pneg %p363
        %p506 = pneg %p360
        %s507 = sand.u32 %s350, 1
        %s508 = scalar_lea.sflag [#allocation7], %s507
        %s509 = sand.u32 %s350, 1
        %s510 = smul.addr %s509, 16
        %s511 = scalar_lea.vmem [#allocation6], %s510
        %p512 = scmp.lt.s32.totalorder %s38, 1
        %s513 = scalar_select %p512, %s38, 1
        %p514 = scmp.lt.s32.totalorder %s39, 2
        %s515 = scalar_select %p514, %s39, 2
        %s516 = smul.addr %s513, 3
        %s517 = sadd.s32 %s515, %s516
        %s518 = smul.addr %s517, 4
        %s519 = scalar_lea.vmem %s1, %s518
        %v520 = vld [vmem:[%s456] sm:$0xff]
        %v521 = vld [vmem:[%s456 + $0x8] sm:$0xff]
        %v522 = vld [vmem:[%s519] sm:$0xf]
        %v523 = vld [vmem:[%s2] sm:$0xff]
        %v524 = vld [vmem:[%s4] sm:$0xff]
        %vm525 = vcmask 31744
        %v527 = vsel %vm525, %v524, 0
        %vm529 = vcmask 1043456
        %v531 = vsel %vm529, %v522, 0
        %533 = vmatprep.subr.mxu0 0.0
        %534 = vmatpush1.msra.mxu0 %v531
        %535 = vmatprep.subr.mxu0 0.0
        %536 = vmatpush1.msra.mxu0 0.0
        %537 = vmatprep.subr.mxu0 0.0
        %538 = vmatpush1.msra.mxu0 0.0
        %539 = vmatprep.subr.mxu0 0.0
        %540 = vmatpush1.msra.mxu0 0.0
        %541 = vmatprep.subr.mxu0 0.0
        %542 = vmatpush1.msra.mxu0 0.0
        %543 = vmatprep.subr.mxu0 0.0
        %544 = vmatpush1.msra.mxu0 0.0
        %545 = vmatprep.subr.mxu0 0.0
        %546 = vmatpush1.msra.mxu0 0.0
        %547 = vmatprep.subr.mxu0 0.0
        %548 = vmatpush1.msra.mxu0 0.0
        %549 = vmatprep.subr.mxu0 0.0
        %550 = vmatpush1.msra.mxu0 0.0
        %551 = vmatprep.subr.mxu0 0.0
        %552 = vmatpush1.msra.mxu0 0.0
        %553 = vmatprep.subr.mxu0 0.0
        %554 = vmatpush1.msra.mxu0 0.0
        %555 = vmatprep.subr.mxu0 0.0
        %556 = vmatpush1.msra.mxu0 0.0
        %557 = vmatprep.subr.mxu0 0.0
        %558 = vmatpush1.msra.mxu0 0.0
        %559 = vmatprep.subr.mxu0 0.0
        %560 = vmatpush1.msra.mxu0 0.0
        %561 = vmatprep.subr.mxu0 0.0
        %562 = vmatpush1.msra.mxu0 0.0
        %563 = vmatprep.subr.mxu0 0.0
        %564 = vmatpush1.msra.mxu0 0.0
        %565 = vmatprep.subr.mxu0 0.0
        %566 = vmatpush1.msra.mxu0 0.0
        %567 = vmatprep.subr.mxu0 0.0
        %568 = vmatpush1.msra.mxu0 0.0
        %569 = vmatprep.subr.mxu0 0.0
        %570 = vmatpush1.msra.mxu0 0.0
        %571 = vmatprep.subr.mxu0 0.0
        %572 = vmatpush1.msra.mxu0 0.0
        %573 = vmatprep.subr.mxu0 0.0
        %574 = vmatpush1.msra.mxu0 0.0
        %575 = vmatprep.subr.mxu0 0.0
        %576 = vmatpush1.msra.mxu0 0.0
        %577 = vmatprep.subr.mxu0 0.0
        %578 = vmatpush1.msra.mxu0 0.0
        %579 = vmatprep.subr.mxu0 0.0
        %580 = vmatpush1.msra.mxu0 0.0
        %581 = vmatprep.subr.mxu0 0.0
        %582 = vmatpush1.msra.mxu0 0.0
        %583 = vmatprep.subr.mxu0 0.0
        %584 = vmatpush1.msra.mxu0 0.0
        %585 = vmatprep.subr.mxu0 0.0
        %586 = vmatpush1.msra.mxu0 0.0
        %587 = vmatprep.subr.mxu0 0.0
        %588 = vmatpush1.msra.mxu0 0.0
        %589 = vmatprep.subr.mxu0 0.0
        %590 = vmatpush1.msra.mxu0 0.0
        %591 = vmatprep.subr.mxu0 0.0
        %592 = vmatpush1.msra.mxu0 0.0
        %593 = vmatprep.subr.mxu0 0.0
        %594 = vmatpush1.msra.mxu0 0.0
        %595 = vmatprep.subr.mxu0 0.0
        %596 = vmatpush1.msra.mxu0 0.0
        %597 = vmatprep.mubr.f32.mxu0 0.0
        %598 = vmatmul.mubr.f32.gmra.mrb[0].mxu0 %v527
        %v599 = vpop.f32.mrb[0].mxu0
        %v600 = vadd.f32 0.0, %v599
        %v601 = vpop.f32.mrb[0].mxu0
        %602 = vdwg.mxu0
        %vm603 = vcmask 130048
        %v605 = vsel %vm603, %v523, 0
        %607 = vmatprep.subr.mxu0 0.0
        %608 = vmatpush1.msra.mxu0 %v520
        %609 = vmatprep.subr.mxu0 0.0
        %610 = vmatpush1.msra.mxu0 %v521
        %611 = vmatprep.subr.mxu0 0.0
        %612 = vmatpush1.msra.mxu0 0.0
        %613 = vmatprep.subr.mxu0 0.0
        %614 = vmatpush1.msra.mxu0 0.0
        %615 = vmatprep.subr.mxu0 0.0
        %616 = vmatpush1.msra.mxu0 0.0
        %617 = vmatprep.subr.mxu0 0.0
        %618 = vmatpush1.msra.mxu0 0.0
        %619 = vmatprep.subr.mxu0 0.0
        %620 = vmatpush1.msra.mxu0 0.0
        %621 = vmatprep.subr.mxu0 0.0
        %622 = vmatpush1.msra.mxu0 0.0
        %623 = vmatprep.subr.mxu0 0.0
        %624 = vmatpush1.msra.mxu0 0.0
        %625 = vmatprep.subr.mxu0 0.0
        %626 = vmatpush1.msra.mxu0 0.0
        %627 = vmatprep.subr.mxu0 0.0
        %628 = vmatpush1.msra.mxu0 0.0
        %629 = vmatprep.subr.mxu0 0.0
        %630 = vmatpush1.msra.mxu0 0.0
        %631 = vmatprep.subr.mxu0 0.0
        %632 = vmatpush1.msra.mxu0 0.0
        %633 = vmatprep.subr.mxu0 0.0
        %634 = vmatpush1.msra.mxu0 0.0
        %635 = vmatprep.subr.mxu0 0.0
        %636 = vmatpush1.msra.mxu0 0.0
        %637 = vmatprep.subr.mxu0 0.0
        %638 = vmatpush1.msra.mxu0 0.0
        %639 = vmatprep.subr.mxu0 0.0
        %640 = vmatpush1.msra.mxu0 0.0
        %641 = vmatprep.subr.mxu0 0.0
        %642 = vmatpush1.msra.mxu0 0.0
        %643 = vmatprep.subr.mxu0 0.0
        %644 = vmatpush1.msra.mxu0 0.0
        %645 = vmatprep.subr.mxu0 0.0
        %646 = vmatpush1.msra.mxu0 0.0
        %647 = vmatprep.subr.mxu0 0.0
        %648 = vmatpush1.msra.mxu0 0.0
        %649 = vmatprep.subr.mxu0 0.0
        %650 = vmatpush1.msra.mxu0 0.0
        %651 = vmatprep.subr.mxu0 0.0
        %652 = vmatpush1.msra.mxu0 0.0
        %653 = vmatprep.subr.mxu0 0.0
        %654 = vmatpush1.msra.mxu0 0.0
        %655 = vmatprep.subr.mxu0 0.0
        %656 = vmatpush1.msra.mxu0 0.0
        %657 = vmatprep.subr.mxu0 0.0
        %658 = vmatpush1.msra.mxu0 0.0
        %659 = vmatprep.subr.mxu0 0.0
        %660 = vmatpush1.msra.mxu0 0.0
        %661 = vmatprep.subr.mxu0 0.0
        %662 = vmatpush1.msra.mxu0 0.0
        %663 = vmatprep.subr.mxu0 0.0
        %664 = vmatpush1.msra.mxu0 0.0
        %665 = vmatprep.subr.mxu0 0.0
        %666 = vmatpush1.msra.mxu0 0.0
        %667 = vmatprep.subr.mxu0 0.0
        %668 = vmatpush1.msra.mxu0 0.0
        %669 = vmatprep.subr.mxu0 0.0
        %670 = vmatpush1.msra.mxu0 0.0
        %671 = vmatprep.mubr.f32.mxu0 0.0
        %672 = vmatmul.mubr.f32.gmra.mrb[0].mxu0 %v605
        %v673 = vpop.f32.mrb[0].mxu0
        %v674 = vadd.f32 %v600, %v673
        %v675 = vpop.f32.mrb[0].mxu0
        %676 = vdwg.mxu0
        %v677 = vld [vmem:[%s6] sm:$0xff]
        %679 = vset.pattern.permute.xlu0 0
        %680 = vperm.xlu0 %679, %v677
        %v681 = vpop.permute.xlu0 %680
        %v683 = vadd.f32 %v674, %v681
        %v684 = vld [vmem:[%s3] sm:$0xff]
        %v685 = vld [vmem:[%s5] sm:$0xff]
        %v687 = vsel %vm525, %v685, 0
        %689 = vmatprep.subr.mxu0 0.0
        %690 = vmatpush1.msra.mxu0 %v531
        %691 = vmatprep.subr.mxu0 0.0
        %692 = vmatpush1.msra.mxu0 0.0
        %693 = vmatprep.subr.mxu0 0.0
        %694 = vmatpush1.msra.mxu0 0.0
        %695 = vmatprep.subr.mxu0 0.0
        %696 = vmatpush1.msra.mxu0 0.0
        %697 = vmatprep.subr.mxu0 0.0
        %698 = vmatpush1.msra.mxu0 0.0
        %699 = vmatprep.subr.mxu0 0.0
        %700 = vmatpush1.msra.mxu0 0.0
        %701 = vmatprep.subr.mxu0 0.0
        %702 = vmatpush1.msra.mxu0 0.0
        %703 = vmatprep.subr.mxu0 0.0
        %704 = vmatpush1.msra.mxu0 0.0
        %705 = vmatprep.subr.mxu0 0.0
        %706 = vmatpush1.msra.mxu0 0.0
        %707 = vmatprep.subr.mxu0 0.0
        %708 = vmatpush1.msra.mxu0 0.0
        %709 = vmatprep.subr.mxu0 0.0
        %710 = vmatpush1.msra.mxu0 0.0
        %711 = vmatprep.subr.mxu0 0.0
        %712 = vmatpush1.msra.mxu0 0.0
        %713 = vmatprep.subr.mxu0 0.0
        %714 = vmatpush1.msra.mxu0 0.0
        %715 = vmatprep.subr.mxu0 0.0
        %716 = vmatpush1.msra.mxu0 0.0
        %717 = vmatprep.subr.mxu0 0.0
        %718 = vmatpush1.msra.mxu0 0.0
        %719 = vmatprep.subr.mxu0 0.0
        %720 = vmatpush1.msra.mxu0 0.0
        %721 = vmatprep.subr.mxu0 0.0
        %722 = vmatpush1.msra.mxu0 0.0
        %723 = vmatprep.subr.mxu0 0.0
        %724 = vmatpush1.msra.mxu0 0.0
        %725 = vmatprep.subr.mxu0 0.0
        %726 = vmatpush1.msra.mxu0 0.0
        %727 = vmatprep.subr.mxu0 0.0
        %728 = vmatpush1.msra.mxu0 0.0
        %729 = vmatprep.subr.mxu0 0.0
        %730 = vmatpush1.msra.mxu0 0.0
        %731 = vmatprep.subr.mxu0 0.0
        %732 = vmatpush1.msra.mxu0 0.0
        %733 = vmatprep.subr.mxu0 0.0
        %734 = vmatpush1.msra.mxu0 0.0
        %735 = vmatprep.subr.mxu0 0.0
        %736 = vmatpush1.msra.mxu0 0.0
        %737 = vmatprep.subr.mxu0 0.0
        %738 = vmatpush1.msra.mxu0 0.0
        %739 = vmatprep.subr.mxu0 0.0
        %740 = vmatpush1.msra.mxu0 0.0
        %741 = vmatprep.subr.mxu0 0.0
        %742 = vmatpush1.msra.mxu0 0.0
        %743 = vmatprep.subr.mxu0 0.0
        %744 = vmatpush1.msra.mxu0 0.0
        %745 = vmatprep.subr.mxu0 0.0
        %746 = vmatpush1.msra.mxu0 0.0
        %747 = vmatprep.subr.mxu0 0.0
        %748 = vmatpush1.msra.mxu0 0.0
        %749 = vmatprep.subr.mxu0 0.0
        %750 = vmatpush1.msra.mxu0 0.0
        %751 = vmatprep.subr.mxu0 0.0
        %752 = vmatpush1.msra.mxu0 0.0
        %753 = vmatprep.mubr.f32.mxu0 0.0
        %754 = vmatmul.mubr.f32.gmra.mrb[0].mxu0 %v687
        %v755 = vpop.f32.mrb[0].mxu0
        %v756 = vadd.f32 0.0, %v755
        %v757 = vpop.f32.mrb[0].mxu0
        %758 = vdwg.mxu0
        %v760 = vsel %vm603, %v684, 0
        %762 = vmatprep.subr.mxu0 0.0
        %763 = vmatpush1.msra.mxu0 %v520
        %764 = vmatprep.subr.mxu0 0.0
        %765 = vmatpush1.msra.mxu0 %v521
        %766 = vmatprep.subr.mxu0 0.0
        %767 = vmatpush1.msra.mxu0 0.0
        %768 = vmatprep.subr.mxu0 0.0
        %769 = vmatpush1.msra.mxu0 0.0
        %770 = vmatprep.subr.mxu0 0.0
        %771 = vmatpush1.msra.mxu0 0.0
        %772 = vmatprep.subr.mxu0 0.0
        %773 = vmatpush1.msra.mxu0 0.0
        %774 = vmatprep.subr.mxu0 0.0
        %775 = vmatpush1.msra.mxu0 0.0
        %776 = vmatprep.subr.mxu0 0.0
        %777 = vmatpush1.msra.mxu0 0.0
        %778 = vmatprep.subr.mxu0 0.0
        %779 = vmatpush1.msra.mxu0 0.0
        %780 = vmatprep.subr.mxu0 0.0
        %781 = vmatpush1.msra.mxu0 0.0
        %782 = vmatprep.subr.mxu0 0.0
        %783 = vmatpush1.msra.mxu0 0.0
        %784 = vmatprep.subr.mxu0 0.0
        %785 = vmatpush1.msra.mxu0 0.0
        %786 = vmatprep.subr.mxu0 0.0
        %787 = vmatpush1.msra.mxu0 0.0
        %788 = vmatprep.subr.mxu0 0.0
        %789 = vmatpush1.msra.mxu0 0.0
        %790 = vmatprep.subr.mxu0 0.0
        %791 = vmatpush1.msra.mxu0 0.0
        %792 = vmatprep.subr.mxu0 0.0
        %793 = vmatpush1.msra.mxu0 0.0
        %794 = vmatprep.subr.mxu0 0.0
        %795 = vmatpush1.msra.mxu0 0.0
        %796 = vmatprep.subr.mxu0 0.0
        %797 = vmatpush1.msra.mxu0 0.0
        %798 = vmatprep.subr.mxu0 0.0
        %799 = vmatpush1.msra.mxu0 0.0
        %800 = vmatprep.subr.mxu0 0.0
        %801 = vmatpush1.msra.mxu0 0.0
        %802 = vmatprep.subr.mxu0 0.0
        %803 = vmatpush1.msra.mxu0 0.0
        %804 = vmatprep.subr.mxu0 0.0
        %805 = vmatpush1.msra.mxu0 0.0
        %806 = vmatprep.subr.mxu0 0.0
        %807 = vmatpush1.msra.mxu0 0.0
        %808 = vmatprep.subr.mxu0 0.0
        %809 = vmatpush1.msra.mxu0 0.0
        %810 = vmatprep.subr.mxu0 0.0
        %811 = vmatpush1.msra.mxu0 0.0
        %812 = vmatprep.subr.mxu0 0.0
        %813 = vmatpush1.msra.mxu0 0.0
        %814 = vmatprep.subr.mxu0 0.0
        %815 = vmatpush1.msra.mxu0 0.0
        %816 = vmatprep.subr.mxu0 0.0
        %817 = vmatpush1.msra.mxu0 0.0
        %818 = vmatprep.subr.mxu0 0.0
        %819 = vmatpush1.msra.mxu0 0.0
        %820 = vmatprep.subr.mxu0 0.0
        %821 = vmatpush1.msra.mxu0 0.0
        %822 = vmatprep.subr.mxu0 0.0
        %823 = vmatpush1.msra.mxu0 0.0
        %824 = vmatprep.subr.mxu0 0.0
        %825 = vmatpush1.msra.mxu0 0.0
        %826 = vmatprep.mubr.f32.mxu0 0.0
        %827 = vmatmul.mubr.f32.gmra.mrb[0].mxu0 %v760
        %v828 = vpop.f32.mrb[0].mxu0
        %v829 = vadd.f32 %v756, %v828
        %v830 = vpop.f32.mrb[0].mxu0
        %831 = vdwg.mxu0
        %v832 = vld [vmem:[%s7] sm:$0xff]
        %834 = vset.pattern.permute.xlu0 0
        %835 = vperm.xlu0 %834, %v832
        %v836 = vpop.permute.xlu0 %835
        %v838 = vadd.f32 %v829, %v836
        %v839 = vxor.u32 %v683, 2147483648
        %v840 = vmul.f32 %v839, 1.442695
        %v841 = vpow.pop %v840
        %v842 = vadd.f32 %v841, 1.0
        %v843 = vrcp.pop %v842
        %v844 = vmul.f32 1.0, %v843
        %v845 = vtanh.pop %v838
        %v846 = vmul.f32 %v844, %v845
        %v847 = vld [vmem:[%s8] sm:$0xff]
        %v848 = vld [vmem:[%s9] sm:$0xff]
        %850 = vset.pattern.permute.xlu0 0
        %851 = vperm.xlu0 %850, %v848
        %v852 = vpop.permute.xlu0 %851
        %vm854 = vcmask 64512
        %v856 = vsel %vm854, %v847, 0
        %858 = vmatprep.subr.mxu0 0.0
        %859 = vmatpush1.msra.mxu0 %v846
        %860 = vmatprep.subr.mxu0 0.0
        %861 = vmatpush1.msra.mxu0 0.0
        %862 = vmatprep.subr.mxu0 0.0
        %863 = vmatpush1.msra.mxu0 0.0
        %864 = vmatprep.subr.mxu0 0.0
        %865 = vmatpush1.msra.mxu0 0.0
        %866 = vmatprep.subr.mxu0 0.0
        %867 = vmatpush1.msra.mxu0 0.0
        %868 = vmatprep.subr.mxu0 0.0
        %869 = vmatpush1.msra.mxu0 0.0
        %870 = vmatprep.subr.mxu0 0.0
        %871 = vmatpush1.msra.mxu0 0.0
        %872 = vmatprep.subr.mxu0 0.0
        %873 = vmatpush1.msra.mxu0 0.0
        %874 = vmatprep.subr.mxu0 0.0
        %875 = vmatpush1.msra.mxu0 0.0
        %876 = vmatprep.subr.mxu0 0.0
        %877 = vmatpush1.msra.mxu0 0.0
        %878 = vmatprep.subr.mxu0 0.0
        %879 = vmatpush1.msra.mxu0 0.0
        %880 = vmatprep.subr.mxu0 0.0
        %881 = vmatpush1.msra.mxu0 0.0
        %882 = vmatprep.subr.mxu0 0.0
        %883 = vmatpush1.msra.mxu0 0.0
        %884 = vmatprep.subr.mxu0 0.0
        %885 = vmatpush1.msra.mxu0 0.0
        %886 = vmatprep.subr.mxu0 0.0
        %887 = vmatpush1.msra.mxu0 0.0
        %888 = vmatprep.subr.mxu0 0.0
        %889 = vmatpush1.msra.mxu0 0.0
        %890 = vmatprep.subr.mxu0 0.0
        %891 = vmatpush1.msra.mxu0 0.0
        %892 = vmatprep.subr.mxu0 0.0
        %893 = vmatpush1.msra.mxu0 0.0
        %894 = vmatprep.subr.mxu0 0.0
        %895 = vmatpush1.msra.mxu0 0.0
        %896 = vmatprep.subr.mxu0 0.0
        %897 = vmatpush1.msra.mxu0 0.0
        %898 = vmatprep.subr.mxu0 0.0
        %899 = vmatpush1.msra.mxu0 0.0
        %900 = vmatprep.subr.mxu0 0.0
        %901 = vmatpush1.msra.mxu0 0.0
        %902 = vmatprep.subr.mxu0 0.0
        %903 = vmatpush1.msra.mxu0 0.0
        %904 = vmatprep.subr.mxu0 0.0
        %905 = vmatpush1.msra.mxu0 0.0
        %906 = vmatprep.subr.mxu0 0.0
        %907 = vmatpush1.msra.mxu0 0.0
        %908 = vmatprep.subr.mxu0 0.0
        %909 = vmatpush1.msra.mxu0 0.0
        %910 = vmatprep.subr.mxu0 0.0
        %911 = vmatpush1.msra.mxu0 0.0
        %912 = vmatprep.subr.mxu0 0.0
        %913 = vmatpush1.msra.mxu0 0.0
        %914 = vmatprep.subr.mxu0 0.0
        %915 = vmatpush1.msra.mxu0 0.0
        %916 = vmatprep.subr.mxu0 0.0
        %917 = vmatpush1.msra.mxu0 0.0
        %918 = vmatprep.subr.mxu0 0.0
        %919 = vmatpush1.msra.mxu0 0.0
        %920 = vmatprep.subr.mxu0 0.0
        %921 = vmatpush1.msra.mxu0 0.0
        %922 = vmatprep.mubr.f32.mxu0 0.0
        %923 = vmatmul.mubr.f32.gmra.mrb[0].mxu0 %v856
        %v924 = vpop.f32.mrb[0].mxu0
        %v925 = vadd.f32 %v852, %v924
        %v926 = vpop.f32.mrb[0].mxu0
        %927 = vdwg.mxu0
        %928 = vst [vmem:[%s504] sm:$0xff] %v925
        %v929 = vld [vmem:[%s10] sm:$0xff]
        %v930 = vld [vmem:[%s10 + $0x8] sm:$0xff]
        %v931 = vld [vmem:[%s11] sm:$0xff]
        %v932 = vld [vmem:[%s11 + $0x8] sm:$0xff]
        %934 = vset.pattern.permute.xlu0 0
        %935 = vperm.xlu0 %934, %v931
        %v936 = vpop.permute.xlu0 %935
        %939 = vset.pattern.permute.xlu0 0
        %940 = vperm.xlu0 %939, %v932
        %v941 = vpop.permute.xlu0 %940
        %v944 = vsel %vm854, %v929, 0
        %v947 = vsel %vm854, %v930, 0
        %949 = vmatprep.subr.mxu0 0.0
        %950 = vmatpush1.msra.mxu0 %v846
        %951 = vmatprep.subr.mxu0 0.0
        %952 = vmatpush1.msra.mxu0 0.0
        %953 = vmatprep.subr.mxu0 0.0
        %954 = vmatpush1.msra.mxu0 0.0
        %955 = vmatprep.subr.mxu0 0.0
        %956 = vmatpush1.msra.mxu0 0.0
        %957 = vmatprep.subr.mxu0 0.0
        %958 = vmatpush1.msra.mxu0 0.0
        %959 = vmatprep.subr.mxu0 0.0
        %960 = vmatpush1.msra.mxu0 0.0
        %961 = vmatprep.subr.mxu0 0.0
        %962 = vmatpush1.msra.mxu0 0.0
        %963 = vmatprep.subr.mxu0 0.0
        %964 = vmatpush1.msra.mxu0 0.0
        %965 = vmatprep.subr.mxu0 0.0
        %966 = vmatpush1.msra.mxu0 0.0
        %967 = vmatprep.subr.mxu0 0.0
        %968 = vmatpush1.msra.mxu0 0.0
        %969 = vmatprep.subr.mxu0 0.0
        %970 = vmatpush1.msra.mxu0 0.0
        %971 = vmatprep.subr.mxu0 0.0
        %972 = vmatpush1.msra.mxu0 0.0
        %973 = vmatprep.subr.mxu0 0.0
        %974 = vmatpush1.msra.mxu0 0.0
        %975 = vmatprep.subr.mxu0 0.0
        %976 = vmatpush1.msra.mxu0 0.0
        %977 = vmatprep.subr.mxu0 0.0
        %978 = vmatpush1.msra.mxu0 0.0
        %979 = vmatprep.subr.mxu0 0.0
        %980 = vmatpush1.msra.mxu0 0.0
        %981 = vmatprep.subr.mxu0 0.0
        %982 = vmatpush1.msra.mxu0 0.0
        %983 = vmatprep.subr.mxu0 0.0
        %984 = vmatpush1.msra.mxu0 0.0
        %985 = vmatprep.subr.mxu0 0.0
        %986 = vmatpush1.msra.mxu0 0.0
        %987 = vmatprep.subr.mxu0 0.0
        %988 = vmatpush1.msra.mxu0 0.0
        %989 = vmatprep.subr.mxu0 0.0
        %990 = vmatpush1.msra.mxu0 0.0
        %991 = vmatprep.subr.mxu0 0.0
        %992 = vmatpush1.msra.mxu0 0.0
        %993 = vmatprep.subr.mxu0 0.0
        %994 = vmatpush1.msra.mxu0 0.0
        %995 = vmatprep.subr.mxu0 0.0
        %996 = vmatpush1.msra.mxu0 0.0
        %997 = vmatprep.subr.mxu0 0.0
        %998 = vmatpush1.msra.mxu0 0.0
        %999 = vmatprep.subr.mxu0 0.0
        %1000 = vmatpush1.msra.mxu0 0.0
        %1001 = vmatprep.subr.mxu0 0.0
        %1002 = vmatpush1.msra.mxu0 0.0
        %1003 = vmatprep.subr.mxu0 0.0
        %1004 = vmatpush1.msra.mxu0 0.0
        %1005 = vmatprep.subr.mxu0 0.0
        %1006 = vmatpush1.msra.mxu0 0.0
        %1007 = vmatprep.subr.mxu0 0.0
        %1008 = vmatpush1.msra.mxu0 0.0
        %1009 = vmatprep.subr.mxu0 0.0
        %1010 = vmatpush1.msra.mxu0 0.0
        %1011 = vmatprep.subr.mxu0 0.0
        %1012 = vmatpush1.msra.mxu0 0.0
        %1013 = vmatprep.mubr.f32.mxu0 0.0
        %1014 = vmatmul.mubr.f32.gmra.mrb[0].mxu0 %v944
        %v1015 = vpop.f32.mrb[0].mxu0
        %v1016 = vadd.f32 %v936, %v1015
        %v1017 = vpop.f32.mrb[0].mxu0
        %1018 = vmatprep.mubr.f32.mxu0 0.0
        %1019 = vmatmul.mubr.f32.gmra.mrb[0].mxu0 %v947
        %v1020 = vpop.f32.mrb[0].mxu0
        %v1021 = vadd.f32 %v941, %v1020
        %v1022 = vpop.f32.mrb[0].mxu0
        %1023 = vdwg.mxu0
        %1024 = vst [vmem:[%s511] sm:$0xff] %v1016
        %1025 = vst [vmem:[%s511 + $0x8] sm:$0xff] %v1021
        %s1026 = sand.u32 %s322, 1
        %s1027 = scalar_lea.sflag [#allocation4], %s1026
        %s1028 = sand.u32 %s322, 1
        %s1029 = smul.addr %s1028, 8
        %s1030 = scalar_lea.vmem [#allocation5], %s1029
        %s1031 = sand.u32 %s350, 1
        %s1032 = scalar_lea.sflag [#allocation7], %s1031
        %s1033 = sand.u32 %s350, 1
        %s1034 = smul.addr %s1033, 16
        %s1035 = scalar_lea.vmem [#allocation6], %s1034
        // Predicated region
        $region73: #{tpu_custom_call.1} parent=67 // pred_check
          %p1036 = pneg %p332
        $region74: #{tpu_custom_call.1} parent=67 // pred_check_branch
          %1038 = sbr.rel (%p1036) target = $region76
        $region75: #{tpu_custom_call.1} parent=67 // pred_region
          %s1040 = ssub.s32 128, 128
          %1041 = vsyncadd %s1027, %s1040
          %s1042 = smul.addr %s38, 3
          %s1043 = sadd.s32 %s39, %s1042
          %s1044 = smul.addr %s1043, 128
          %s1045 = scalar_lea.hbm %s12, %s1044
          %s1047 = sshll.u32 %s1030, 4
          %s1048 = int_to_ptr.vmem [resolvable:$true] %s1047
          %1050 = dma.vmem_to_hbm [thread:$0]  %s1048, 128, %s1045, %s1027
        $region76: #{tpu_custom_call.1} parent=67 // pred_fallthru
          _
        // Predicated region
        $region77: #{tpu_custom_call.1} parent=67 // pred_check
          %p1051 = pneg %p360
        $region78: #{tpu_custom_call.1} parent=67 // pred_check_branch
          %1053 = sbr.rel (%p1051) target = $region80
        $region79: #{tpu_custom_call.1} parent=67 // pred_region
          %s1055 = ssub.s32 256, 256
          %1056 = vsyncadd %s1032, %s1055
          %s1057 = smul.addr %s38, 6
          %s1058 = sadd.s32 %s39, %s1057
          %s1059 = smul.addr %s1058, 128
          %s1060 = scalar_lea.hbm %s13, %s1059
          %s1061 = sshll.u32 %s1035, 4
          %s1062 = int_to_ptr.vmem [resolvable:$true] %s1061
          %1067 = dma.vmem_to_hbm [thread:$0]  %s1062, 256, %s1060, %s1032, 128, 384, 8
        $region80: #{tpu_custom_call.1} parent=67 // pred_fallthru
          _
      $region68: #{tpu_custom_call.1} parent=5 // pred_fallthru
        _
      %p1068 = scmp.le.s32.totalorder 2, %s29
      // Predicated region
      $region81: #{tpu_custom_call.1} parent=5 // pred_check
        %p1069 = pneg %p1068
      $region82: #{tpu_custom_call.1} parent=5 // pred_check_branch
        %1071 = sbr.rel (%p1069) target = $region84
      $region83: #{tpu_custom_call.1} parent=5 // pred_region
        %s1072 = ssub.s32 %s29, 2
        // Predicated region
        $region85: #{tpu_custom_call.1} parent=83 // pred_check
          %p1073 = pneg %p338
        $region86: #{tpu_custom_call.1} parent=83 // pred_check_branch
          %1075 = sbr.rel (%p1073) target = $region88
        $region87: #{tpu_custom_call.1} parent=83 // pred_region
          %s1076 = sand.u32 %s323, 1
          %s1077 = scalar_lea.sflag [#allocation4], %s1076
          %s1078 = sand.u32 %s323, 1
          %s1079 = smul.addr %s1078, 8
          %s1080 = scalar_lea.vmem [#allocation5], %s1079
          %1081 = dma.done %s1077, 128
        $region88: #{tpu_custom_call.1} parent=83 // pred_fallthru
          _
        // Predicated region
        $region89: #{tpu_custom_call.1} parent=83 // pred_check
          %p1082 = pneg %p366
        $region90: #{tpu_custom_call.1} parent=83 // pred_check_branch
          %1084 = sbr.rel (%p1082) target = $region92
        $region91: #{tpu_custom_call.1} parent=83 // pred_region
          %s1085 = sand.u32 %s351, 1
          %s1086 = scalar_lea.sflag [#allocation7], %s1085
          %s1087 = sand.u32 %s351, 1
          %s1088 = smul.addr %s1087, 16
          %s1089 = scalar_lea.vmem [#allocation6], %s1088
          %1090 = dma.done %s1086, 256
        $region92: #{tpu_custom_call.1} parent=83 // pred_fallthru
          _
      $region84: #{tpu_custom_call.1} parent=5 // pred_fallthru
        _
    $region6: #{tpu_custom_call.1} parent=1 // loop_footer
      %s33 = sadd.s32 1, %s29
    $region7: #{tpu_custom_call.1} parent=1 // loop_footer_branch
      %28 = sbr.rel target = $region3
    $region8: #{tpu_custom_call.1} parent=1 // loop_exit
      _
    %1091 = vsyncpa [#allocation3], 1
    %s1092 = scalar_lea.sflag [#allocation3], 1
    %1093 = vsyncpa %s1092, 1
    %1094 = vsyncpa [#allocation4], 1
    %s1095 = scalar_lea.sflag [#allocation4], 1
    %1096 = vsyncpa %s1095, 1
    %1097 = vsyncpa [#allocation7], 1
    %s1098 = scalar_lea.sflag [#allocation7], 1
    %1099 = vsyncpa %s1098, 1

</llo_original>
